<compile_context>
chip_gen: v7x
topology: tpu7x:2x2x1
jax: 0.10.0
libtpu: 0.0.40
codegen_flags: <defaults>
</compile_context>

<pallas_src>
import numpy as np
import jax
import jax.numpy as jnp
from jax import lax
from jax.experimental import pallas as pl
from jax.experimental.pallas import tpu as pltpu


def _round_up(x: int, m: int) -> int:
    return ((x + m - 1) // m) * m


# ----------------------------------------------------------------------------
# Kernel factory.  refs = (x, w_z, [w_hidden_stack,] w_out, b_all, out)
#   x:        (TILE_B, latent_p)           compute_dtype
#   w_z:      (latent_p, node_p)           compute_dtype
#   w_hidden: (dec_dim, node_p, node_p)    compute_dtype (only if dec_dim > 0)
#   w_out:    (node_p, out_p)              compute_dtype
#   b_all:    (dec_dim + 2, P) packed f32 biases, P = max(node_p, out_p)
#   out:      (TILE_B, out_p)
# ----------------------------------------------------------------------------
def _make_decoder_kernel(dec_dim: int, activation: str, node_p: int, out_p: int,
                         compute_dtype):
    def _act(h):
        if activation == "relu":
            return jnp.maximum(h, 0.0)
        elif activation == "tanh":
            return jnp.tanh(h)
        elif activation == "sigmoid":
            return jax.nn.sigmoid(h)
        else:
            raise ValueError(f"unsupported activation: {activation}")

    def kernel(*refs):
        x_ref = refs[0]
        w_z_ref = refs[1]
        if dec_dim > 0:
            w_hid_ref, w_out_ref, b_ref, out_ref = refs[2:]
        else:
            w_out_ref, b_ref, out_ref = refs[2:]

        b_all = b_ref[...]                      # tiny, f32, load once

        # layer 'z'  (operands already compute_dtype; accumulate in f32)
        h = jnp.dot(x_ref[...], w_z_ref[...],
                    preferred_element_type=jnp.float32)
        h = _act(h + b_all[0:1, :node_p])

        # hidden layers dec_1 .. dec_D
        if dec_dim > 6:
            # large depth: keep one layer's working set live at a time
            def body(l, h):
                hh = jnp.dot(h.astype(compute_dtype), w_hid_ref[l],
                             preferred_element_type=jnp.float32)
                b = b_ref[pl.ds(l + 1, 1), :][:, :node_p]
                return _act(hh + b)
            h = lax.fori_loop(0, dec_dim, body, h)
        else:
            for l in range(dec_dim):            # small depth: unrolled
                hh = jnp.dot(h.astype(compute_dtype), w_hid_ref[l],
                             preferred_element_type=jnp.float32)
                h = _act(hh + b_all[l + 1:l + 2, :node_p])

        # output layer + sigmoid (f32 elementwise)
        y = jnp.dot(h.astype(compute_dtype), w_out_ref[...],
                    preferred_element_type=jnp.float32)
        y = y + b_all[dec_dim + 1:dec_dim + 2, :out_p]
        out_ref[...] = jax.nn.sigmoid(y).astype(out_ref.dtype)

    return kernel


# ----------------------------------------------------------------------------
# One-time prepare: pad to lane-dense shapes, pack biases, pre-cast weights.
# params: list of (w, b) in order [z, dec_1..dec_D, output];
#         w is (in, out) (already transposed vs torch), b is (1, out).
# ----------------------------------------------------------------------------
def prepare_decoder_params(params, dec_dim: int, compute_dtype=jnp.bfloat16):
    latent, node = params[0][0].shape
    out_dim = params[-1][0].shape[1]

    latent_p = _round_up(latent, 128)
    node_p = _round_up(node, 128)
    out_p = _round_up(out_dim, 128)
    bias_p = max(node_p, out_p)

    def pad2(a, rp, cp, dtype):
        return (jnp.zeros((rp, cp), dtype)
                .at[:a.shape[0], :a.shape[1]].set(a.astype(dtype)))

    w_z = pad2(params[0][0], latent_p, node_p, compute_dtype)
    w_out = pad2(params[-1][0], node_p, out_p, compute_dtype)
    w_hid = None
    if dec_dim > 0:
        w_hid = jnp.stack([pad2(params[1 + i][0], node_p, node_p, compute_dtype)
                           for i in range(dec_dim)])

    num_layers = dec_dim + 2
    b_all = jnp.zeros((num_layers, bias_p), jnp.float32)
    for li, (_, b) in enumerate(params):
        b_all = b_all.at[li, :b.shape[1]].set(b.reshape(-1).astype(jnp.float32))

    return dict(w_z=w_z, w_hid=w_hid, w_out=w_out, b_all=b_all,
                dec_dim=dec_dim, latent=latent, node=node, out_dim=out_dim,
                latent_p=latent_p, node_p=node_p, out_p=out_p,
                compute_dtype=compute_dtype)


# ----------------------------------------------------------------------------
# Forward: pads/casts x, builds the batch grid, calls the fused kernel.
# ----------------------------------------------------------------------------
def decoder_forward(x, prepared, activation: str = "relu",
                    tile_b: int | None = None):
    compute_dtype = prepared["compute_dtype"]
    dec_dim = prepared["dec_dim"]
    latent, out_dim = prepared["latent"], prepared["out_dim"]
    latent_p, node_p, out_p = (prepared["latent_p"], prepared["node_p"],
                               prepared["out_p"])

    batch = x.shape[0]
    c_itemsize = np.dtype(compute_dtype).itemsize
    sub = max(8, 32 // c_itemsize)          # sublane multiple (16 for bf16)

    if tile_b is None:
        # large M tiles amortize per-step overhead and fill the MXU M dim
        tile_b = min(_round_up(batch, sub), 512)
    tile_b = _round_up(tile_b, sub)
    batch_p = _round_up(batch, tile_b)
    # v7x megacore: make sure there are >= 2 batch tiles when the tile is big
    if batch_p // tile_b == 1 and tile_b >= 256:
        tile_b = _round_up(tile_b // 2, sub)
        batch_p = _round_up(batch, tile_b)

    # pad + cast input once in the wrapper (halves per-tile DMA bytes for bf16)
    x_p = (jnp.zeros((batch_p, latent_p), compute_dtype)
           .at[:batch, :latent].set(x.astype(compute_dtype)))

    operands = [x_p, prepared["w_z"]]
    if dec_dim > 0:
        operands.append(prepared["w_hid"])
    operands += [prepared["w_out"], prepared["b_all"]]

    # --- VMEM budget (generation-aware: v7x 64 MiB phys, v5e/v6e 128 MiB) ----
    param_bytes = sum(int(np.prod(a.shape)) * a.dtype.itemsize
                      for a in operands[1:])
    out_itemsize = np.dtype(x.dtype).itemsize
    io_bytes = 2 * tile_b * (latent_p * c_itemsize + out_p * out_itemsize)
    act_bytes = 4 * tile_b * max(node_p, out_p) * 4
    try:
        phys_vmem = int(getattr(pltpu.get_tpu_info(), "vmem_capacity_bytes",
                                64 << 20))
    except Exception:
        phys_vmem = 64 << 20
    cap = (100 << 20) if phys_vmem > (80 << 20) else (48 << 20)

    kernel = _make_decoder_kernel(dec_dim, activation, node_p, out_p,
                                  compute_dtype)
    grid = (batch_p // tile_b,)

    def _build(single_buffer_weights: bool):
        wf = 1 if single_buffer_weights else 2
        needed = wf * param_bytes + io_bytes + act_bytes
        vmem_limit = int(min(max(int(1.5 * needed), 16 << 20), cap))

        def _resident(shape):
            idx = lambda i, _n=len(shape): (0,) * _n
            if single_buffer_weights:
                # never-changing operand: no point double-buffering it
                return pl.BlockSpec(shape, idx, pipeline_mode=pl.Buffered(1))
            return pl.BlockSpec(shape, idx)

        in_specs = [pl.BlockSpec((tile_b, latent_p), lambda i: (i, 0)),
                    _resident(prepared["w_z"].shape)]
        if dec_dim > 0:
            in_specs.append(_resident(prepared["w_hid"].shape))
        in_specs += [_resident(prepared["w_out"].shape),
                     _resident(prepared["b_all"].shape)]
        out_spec = pl.BlockSpec((tile_b, out_p), lambda i: (i, 0))

        return pl.pallas_call(
            kernel,
            out_shape=jax.ShapeDtypeStruct((batch_p, out_p), x.dtype),
            grid=grid,
            in_specs=in_specs,
            out_specs=out_spec,
            compiler_params=pltpu.CompilerParams(
                dimension_semantics=("parallel",),
                vmem_limit_bytes=vmem_limit),
        )

    try:
        out = jax.block_until_ready(_build(True)(*operands))
    except Exception:
        # fallback if this JAX/Mosaic build rejects single-buffered specs
        out = jax.block_until_ready(_build(False)(*operands))

    return out[:batch, :out_dim]


# ----------------------------------------------------------------------------
# Deterministic parameter init (matches nn.Linear fan-in init; synthetic).
# ----------------------------------------------------------------------------
def init_decoder_params(key, dec_dim, output_dim, latent_dim, node_count):
    dims = [(latent_dim, node_count)]
    dims += [(node_count, node_count)] * dec_dim
    dims += [(node_count, output_dim)]

    params = []
    for (fan_in, fan_out) in dims:
        key, kw, kb = jax.random.split(key, 3)
        bound = 1.0 / np.sqrt(fan_in)
        # stored already transposed: (in, out) == W^T of torch's (out, in)
        w = jax.random.uniform(kw, (fan_in, fan_out), jnp.float32, -bound, bound)
        b = jax.random.uniform(kb, (1, fan_out), jnp.float32, -bound, bound)
        params.append((w, b))
    return params


# ----------------------------------------------------------------------------
# Pure-JAX reference (mirrors the PyTorch forward exactly, f32).
# ----------------------------------------------------------------------------
def decoder_reference(x, params, dec_dim, activation="relu"):
    act = {"relu": lambda h: jnp.maximum(h, 0.0),
           "tanh": jnp.tanh,
           "sigmoid": jax.nn.sigmoid}[activation]
    h = x
    for layer in range(dec_dim + 1):
        w, b = params[layer]
        h = act(h @ w + b)
    w, b = params[-1]
    return jax.nn.sigmoid(h @ w + b)


if __name__ == "__main__":
    key = jax.random.PRNGKey(0)

    # --- config 1: small shapes, f32 compute (bit-tight vs reference) --------
    dec_dim = 2
    latent_dim = 8
    node_count = 32
    output_dim = 16
    batch = 8
    activation = "tanh"

    key, kx = jax.random.split(key)
    x = jax.random.normal(kx, (batch, latent_dim), jnp.float32)
    params = init_decoder_params(key, dec_dim, output_dim, latent_dim, node_count)

    prep_f32 = prepare_decoder_params(params, dec_dim, compute_dtype=jnp.float32)
    out = decoder_forward(x, prep_f32, activation)
    ref = decoder_reference(x, params, dec_dim, activation)
    np.testing.assert_allclose(np.asarray(out), np.asarray(ref),
                               rtol=1e-5, atol=1e-5)

    # --- config 2: larger batch, default bf16 MXU feed, multi-tile grid ------
    key, kx2 = jax.random.split(key)
    x2 = jax.random.normal(kx2, (512, 16), jnp.float32)
    params2 = init_decoder_params(key, 2, 64, 16, 128)
    prep_bf16 = prepare_decoder_params(params2, 2)       # compute_dtype=bf16
    out2 = decoder_forward(x2, prep_bf16, "relu")
    ref2 = decoder_reference(x2, params2, 2, "relu")
    # bf16 operands (f32 accumulation): loosen tolerance accordingly
    np.testing.assert_allclose(np.asarray(out2), np.asarray(ref2),
                               rtol=2e-2, atol=2e-2)

    print("KERNEL_OK")
</pallas_src>

<mosaic_0001>
module attributes {stable_mosaic.version = 11 : i64} {
  func.func @kernel(%arg0: i32, %arg1: memref<8x128xf32, #tpu.memory_space<vmem>>, %arg2: memref<128x128xf32, #tpu.memory_space<vmem>>, %arg3: memref<2x128x128xf32, #tpu.memory_space<vmem>>, %arg4: memref<128x128xf32, #tpu.memory_space<vmem>>, %arg5: memref<4x128xf32, #tpu.memory_space<vmem>>, %arg6: memref<8x128xf32, #tpu.memory_space<vmem>>) attributes {dimension_semantics = [#tpu.dimension_semantics<parallel>], iteration_bounds = array<i64: 1>, scalar_prefetch = 0 : i64, scratch_operands = 0 : i64, tpu.core_type = #tpu.core_type<tc>, window_params = [{transform_indices = @transform_0, window_bounds = array<i64: 8, 128>}, {pipeline_mode = #tpu.pipeline_mode<synchronous>, transform_indices = @transform_1, window_bounds = array<i64: 128, 128>}, {pipeline_mode = #tpu.pipeline_mode<synchronous>, transform_indices = @transform_2, window_bounds = array<i64: 2, 128, 128>}, {pipeline_mode = #tpu.pipeline_mode<synchronous>, transform_indices = @transform_3, window_bounds = array<i64: 128, 128>}, {pipeline_mode = #tpu.pipeline_mode<synchronous>, transform_indices = @transform_4, window_bounds = array<i64: 4, 128>}, {transform_indices = @transform_5, window_bounds = array<i64: 8, 128>}]} {
    %c0 = arith.constant 0 : index
    %c0_0 = arith.constant 0 : index
    %0 = vector.load %arg5[%c0, %c0_0] : memref<4x128xf32, #tpu.memory_space<vmem>>, vector<4x128xf32>
    %c0_1 = arith.constant 0 : index
    %c0_2 = arith.constant 0 : index
    %1 = vector.load %arg1[%c0_1, %c0_2] : memref<8x128xf32, #tpu.memory_space<vmem>>, vector<8x128xf32>
    %c0_3 = arith.constant 0 : index
    %c0_4 = arith.constant 0 : index
    %2 = vector.load %arg2[%c0_3, %c0_4] : memref<128x128xf32, #tpu.memory_space<vmem>>, vector<128x128xf32>
    %cst = arith.constant dense<0.000000e+00> : vector<8x128xf32>
    %3 = tpu.matmul %1, %2, %cst {dimension_numbers = #tpu.dot_dimension_numbers<[1], [0], [0], [1], [0, 0, 1, 1], [], []>} : vector<8x128xf32>, vector<128x128xf32>, vector<8x128xf32> -> vector<8x128xf32>
    %4 = vector.extract_strided_slice %0 {offsets = [0, 0], sizes = [1, 128], strides = [1, 1]} : vector<4x128xf32> to vector<1x128xf32>
    %5 = vector.broadcast %4 : vector<1x128xf32> to vector<8x128xf32>
    %6 = arith.addf %3, %5 : vector<8x128xf32>
    %7 = math.tanh %6 : vector<8x128xf32>
    %c0_5 = arith.constant 0 : index
    %c0_6 = arith.constant 0 : index
    %c0_7 = arith.constant 0 : index
    %8 = vector.load %arg3[%c0_5, %c0_6, %c0_7] : memref<2x128x128xf32, #tpu.memory_space<vmem>>, vector<1x128x128xf32>
    %9 = vector.shape_cast %8 : vector<1x128x128xf32> to vector<128x128xf32>
    %cst_8 = arith.constant dense<0.000000e+00> : vector<8x128xf32>
    %10 = tpu.matmul %7, %9, %cst_8 {dimension_numbers = #tpu.dot_dimension_numbers<[1], [0], [0], [1], [0, 0, 1, 1], [], []>} : vector<8x128xf32>, vector<128x128xf32>, vector<8x128xf32> -> vector<8x128xf32>
    %11 = vector.extract_strided_slice %0 {offsets = [1, 0], sizes = [1, 128], strides = [1, 1]} : vector<4x128xf32> to vector<1x128xf32>
    %12 = vector.broadcast %11 : vector<1x128xf32> to vector<8x128xf32>
    %13 = arith.addf %10, %12 : vector<8x128xf32>
    %14 = math.tanh %13 : vector<8x128xf32>
    %c1 = arith.constant 1 : index
    %c0_9 = arith.constant 0 : index
    %c0_10 = arith.constant 0 : index
    %15 = vector.load %arg3[%c1, %c0_9, %c0_10] : memref<2x128x128xf32, #tpu.memory_space<vmem>>, vector<1x128x128xf32>
    %16 = vector.shape_cast %15 : vector<1x128x128xf32> to vector<128x128xf32>
    %cst_11 = arith.constant dense<0.000000e+00> : vector<8x128xf32>
    %17 = tpu.matmul %14, %16, %cst_11 {dimension_numbers = #tpu.dot_dimension_numbers<[1], [0], [0], [1], [0, 0, 1, 1], [], []>} : vector<8x128xf32>, vector<128x128xf32>, vector<8x128xf32> -> vector<8x128xf32>
    %18 = vector.extract_strided_slice %0 {offsets = [2, 0], sizes = [1, 128], strides = [1, 1]} : vector<4x128xf32> to vector<1x128xf32>
    %19 = vector.broadcast %18 : vector<1x128xf32> to vector<8x128xf32>
    %20 = arith.addf %17, %19 : vector<8x128xf32>
    %21 = math.tanh %20 : vector<8x128xf32>
    %c0_12 = arith.constant 0 : index
    %c0_13 = arith.constant 0 : index
    %22 = vector.load %arg4[%c0_12, %c0_13] : memref<128x128xf32, #tpu.memory_space<vmem>>, vector<128x128xf32>
    %cst_14 = arith.constant dense<0.000000e+00> : vector<8x128xf32>
    %23 = tpu.matmul %21, %22, %cst_14 {dimension_numbers = #tpu.dot_dimension_numbers<[1], [0], [0], [1], [0, 0, 1, 1], [], []>} : vector<8x128xf32>, vector<128x128xf32>, vector<8x128xf32> -> vector<8x128xf32>
    %24 = vector.extract_strided_slice %0 {offsets = [3, 0], sizes = [1, 128], strides = [1, 1]} : vector<4x128xf32> to vector<1x128xf32>
    %25 = vector.broadcast %24 : vector<1x128xf32> to vector<8x128xf32>
    %26 = arith.addf %23, %25 : vector<8x128xf32>
    %27 = arith.negf %26 : vector<8x128xf32>
    %28 = math.exp %27 : vector<8x128xf32>
    %cst_15 = arith.constant 1.000000e+00 : f32
    %29 = vector.broadcast %cst_15 : f32 to vector<8x128xf32>
    %30 = arith.addf %29, %28 : vector<8x128xf32>
    %31 = arith.divf %29, %30 : vector<8x128xf32>
    %c0_16 = arith.constant 0 : index
    %c0_17 = arith.constant 0 : index
    %32 = vector.load %arg6[%c0_16, %c0_17] : memref<8x128xf32, #tpu.memory_space<vmem>>, vector<8x128xf32>
    tpu.vector_store %arg6[%c0_16, %c0_17], %31 {strides = array<i32>} : memref<8x128xf32, #tpu.memory_space<vmem>>, vector<8x128xf32>,
    return
  }
  func.func @transform_0(%arg0: i32) -> (i32, i32) {
    %c0_i32 = arith.constant 0 : i32
    %c0_i32_0 = arith.constant 0 : i32
    return %arg0, %c0_i32 : i32, i32
  }
  func.func @transform_1(%arg0: i32) -> (i32, i32) {
    %c0_i32 = arith.constant 0 : i32
    %c0_i32_0 = arith.constant 0 : i32
    %c0_i32_1 = arith.constant 0 : i32
    return %c0_i32, %c0_i32_0 : i32, i32
  }
  func.func @transform_2(%arg0: i32) -> (i32, i32, i32) {
    %c0_i32 = arith.constant 0 : i32
    %c0_i32_0 = arith.constant 0 : i32
    %c0_i32_1 = arith.constant 0 : i32
    %c0_i32_2 = arith.constant 0 : i32
    return %c0_i32, %c0_i32_0, %c0_i32_1 : i32, i32, i32
  }
  func.func @transform_3(%arg0: i32) -> (i32, i32) {
    %c0_i32 = arith.constant 0 : i32
    %c0_i32_0 = arith.constant 0 : i32
    %c0_i32_1 = arith.constant 0 : i32
    return %c0_i32, %c0_i32_0 : i32, i32
  }
  func.func @transform_4(%arg0: i32) -> (i32, i32) {
    %c0_i32 = arith.constant 0 : i32
    %c0_i32_0 = arith.constant 0 : i32
    %c0_i32_1 = arith.constant 0 : i32
    return %c0_i32, %c0_i32_0 : i32, i32
  }
  func.func @transform_5(%arg0: i32) -> (i32, i32) {
    %c0_i32 = arith.constant 0 : i32
    %c0_i32_0 = arith.constant 0 : i32
    return %arg0, %c0_i32 : i32, i32
  }
}

module attributes {stable_mosaic.version = 11 : i64} {
  func.func @kernel(%arg0: i32, %arg1: memref<8x128xf32, #tpu.memory_space<vmem>>, %arg2: memref<128x128xf32, #tpu.memory_space<vmem>>, %arg3: memref<2x128x128xf32, #tpu.memory_space<vmem>>, %arg4: memref<128x128xf32, #tpu.memory_space<vmem>>, %arg5: memref<4x128xf32, #tpu.memory_space<vmem>>, %arg6: memref<8x128xf32, #tpu.memory_space<vmem>>) attributes {dimension_semantics = [#tpu.dimension_semantics<parallel>], iteration_bounds = array<i64: 1>, scalar_prefetch = 0 : i64, scratch_operands = 0 : i64, tpu.core_type = #tpu.core_type<tc>, window_params = [{transform_indices = @transform_0, window_bounds = array<i64: 8, 128>}, {pipeline_mode = #tpu.pipeline_mode<synchronous>, transform_indices = @transform_1, window_bounds = array<i64: 128, 128>}, {pipeline_mode = #tpu.pipeline_mode<synchronous>, transform_indices = @transform_2, window_bounds = array<i64: 2, 128, 128>}, {pipeline_mode = #tpu.pipeline_mode<synchronous>, transform_indices = @transform_3, window_bounds = array<i64: 128, 128>}, {pipeline_mode = #tpu.pipeline_mode<synchronous>, transform_indices = @transform_4, window_bounds = array<i64: 4, 128>}, {transform_indices = @transform_5, window_bounds = array<i64: 8, 128>}]} {
    %c0 = arith.constant 0 : index
    %c0_0 = arith.constant 0 : index
    %0 = vector.load %arg5[%c0, %c0_0] : memref<4x128xf32, #tpu.memory_space<vmem>>, vector<4x128xf32>
    %c0_1 = arith.constant 0 : index
    %c0_2 = arith.constant 0 : index
    %1 = vector.load %arg1[%c0_1, %c0_2] : memref<8x128xf32, #tpu.memory_space<vmem>>, vector<8x128xf32>
    %c0_3 = arith.constant 0 : index
    %c0_4 = arith.constant 0 : index
    %2 = vector.load %arg2[%c0_3, %c0_4] : memref<128x128xf32, #tpu.memory_space<vmem>>, vector<128x128xf32>
    %cst = arith.constant dense<0.000000e+00> : vector<8x128xf32>
    %3 = tpu.matmul %1, %2, %cst {dimension_numbers = #tpu.dot_dimension_numbers<[1], [0], [0], [1], [0, 0, 1, 1], [], []>} : vector<8x128xf32>, vector<128x128xf32>, vector<8x128xf32> -> vector<8x128xf32>
    %4 = vector.extract_strided_slice %0 {offsets = [0, 0], sizes = [1, 128], strides = [1, 1]} : vector<4x128xf32> to vector<1x128xf32>
    %5 = vector.broadcast %4 : vector<1x128xf32> to vector<8x128xf32>
    %6 = arith.addf %3, %5 : vector<8x128xf32>
    %7 = math.tanh %6 : vector<8x128xf32>
    %c0_5 = arith.constant 0 : index
    %c0_6 = arith.constant 0 : index
    %c0_7 = arith.constant 0 : index
    %8 = vector.load %arg3[%c0_5, %c0_6, %c0_7] : memref<2x128x128xf32, #tpu.memory_space<vmem>>, vector<1x128x128xf32>
    %9 = vector.shape_cast %8 : vector<1x128x128xf32> to vector<128x128xf32>
    %cst_8 = arith.constant dense<0.000000e+00> : vector<8x128xf32>
    %10 = tpu.matmul %7, %9, %cst_8 {dimension_numbers = #tpu.dot_dimension_numbers<[1], [0], [0], [1], [0, 0, 1, 1], [], []>} : vector<8x128xf32>, vector<128x128xf32>, vector<8x128xf32> -> vector<8x128xf32>
    %11 = vector.extract_strided_slice %0 {offsets = [1, 0], sizes = [1, 128], strides = [1, 1]} : vector<4x128xf32> to vector<1x128xf32>
    %12 = vector.broadcast %11 : vector<1x128xf32> to vector<8x128xf32>
    %13 = arith.addf %10, %12 : vector<8x128xf32>
    %14 = math.tanh %13 : vector<8x128xf32>
    %c1 = arith.constant 1 : index
    %c0_9 = arith.constant 0 : index
    %c0_10 = arith.constant 0 : index
    %15 = vector.load %arg3[%c1, %c0_9, %c0_10] : memref<2x128x128xf32, #tpu.memory_space<vmem>>, vector<1x128x128xf32>
    %16 = vector.shape_cast %15 : vector<1x128x128xf32> to vector<128x128xf32>
    %cst_11 = arith.constant dense<0.000000e+00> : vector<8x128xf32>
    %17 = tpu.matmul %14, %16, %cst_11 {dimension_numbers = #tpu.dot_dimension_numbers<[1], [0], [0], [1], [0, 0, 1, 1], [], []>} : vector<8x128xf32>, vector<128x128xf32>, vector<8x128xf32> -> vector<8x128xf32>
    %18 = vector.extract_strided_slice %0 {offsets = [2, 0], sizes = [1, 128], strides = [1, 1]} : vector<4x128xf32> to vector<1x128xf32>
    %19 = vector.broadcast %18 : vector<1x128xf32> to vector<8x128xf32>
    %20 = arith.addf %17, %19 : vector<8x128xf32>
    %21 = math.tanh %20 : vector<8x128xf32>
    %c0_12 = arith.constant 0 : index
    %c0_13 = arith.constant 0 : index
    %22 = vector.load %arg4[%c0_12, %c0_13] : memref<128x128xf32, #tpu.memory_space<vmem>>, vector<128x128xf32>
    %cst_14 = arith.constant dense<0.000000e+00> : vector<8x128xf32>
    %23 = tpu.matmul %21, %22, %cst_14 {dimension_numbers = #tpu.dot_dimension_numbers<[1], [0], [0], [1], [0, 0, 1, 1], [], []>} : vector<8x128xf32>, vector<128x128xf32>, vector<8x128xf32> -> vector<8x128xf32>
    %24 = vector.extract_strided_slice %0 {offsets = [3, 0], sizes = [1, 128], strides = [1, 1]} : vector<4x128xf32> to vector<1x128xf32>
    %25 = vector.broadcast %24 : vector<1x128xf32> to vector<8x128xf32>
    %26 = arith.addf %23, %25 : vector<8x128xf32>
    %27 = arith.negf %26 : vector<8x128xf32>
    %28 = math.exp %27 : vector<8x128xf32>
    %cst_15 = arith.constant 1.000000e+00 : f32
    %29 = vector.broadcast %cst_15 : f32 to vector<8x128xf32>
    %30 = arith.addf %29, %28 : vector<8x128xf32>
    %31 = arith.divf %29, %30 : vector<8x128xf32>
    %c0_16 = arith.constant 0 : index
    %c0_17 = arith.constant 0 : index
    %32 = vector.load %arg6[%c0_16, %c0_17] : memref<8x128xf32, #tpu.memory_space<vmem>>, vector<8x128xf32>
    tpu.vector_store %arg6[%c0_16, %c0_17], %31 {strides = array<i32>} : memref<8x128xf32, #tpu.memory_space<vmem>>, vector<8x128xf32>,
    return
  }
  func.func @transform_0(%arg0: i32) -> (i32, i32) {
    %c0_i32 = arith.constant 0 : i32
    %c0_i32_0 = arith.constant 0 : i32
    return %arg0, %c0_i32 : i32, i32
  }
  func.func @transform_1(%arg0: i32) -> (i32, i32) {
    %c0_i32 = arith.constant 0 : i32
    %c0_i32_0 = arith.constant 0 : i32
    %c0_i32_1 = arith.constant 0 : i32
    return %c0_i32, %c0_i32_0 : i32, i32
  }
  func.func @transform_2(%arg0: i32) -> (i32, i32, i32) {
    %c0_i32 = arith.constant 0 : i32
    %c0_i32_0 = arith.constant 0 : i32
    %c0_i32_1 = arith.constant 0 : i32
    %c0_i32_2 = arith.constant 0 : i32
    return %c0_i32, %c0_i32_0, %c0_i32_1 : i32, i32, i32
  }
  func.func @transform_3(%arg0: i32) -> (i32, i32) {
    %c0_i32 = arith.constant 0 : i32
    %c0_i32_0 = arith.constant 0 : i32
    %c0_i32_1 = arith.constant 0 : i32
    return %c0_i32, %c0_i32_0 : i32, i32
  }
  func.func @transform_4(%arg0: i32) -> (i32, i32) {
    %c0_i32 = arith.constant 0 : i32
    %c0_i32_0 = arith.constant 0 : i32
    %c0_i32_1 = arith.constant 0 : i32
    return %c0_i32, %c0_i32_0 : i32, i32
  }
  func.func @transform_5(%arg0: i32) -> (i32, i32) {
    %c0_i32 = arith.constant 0 : i32
    %c0_i32_0 = arith.constant 0 : i32
    return %arg0, %c0_i32 : i32, i32
  }
}

</mosaic_0001>

<llo_original>
// kernel: tpu_custom_call.1
$region0: #{tpu_custom_call.1}
  #allocation0 [shape = 'u32[]', space=smem, size = 0x4, offset = 0x4, fixed_abs, tag = 'smem constant byte address 0x4 - core index']
  #allocation1 [shape = 'u32[144,128]{1,0:T(1,128)}', space=vmem, size = 0x12000, scoped, tag = 'internal scratch']
  %s0 = inlined_call_operand.hbm [shape: f32[8,128], index: 0, kind: input, shape index: {}]
  %s1 = inlined_call_operand.hbm [shape: f32[128,128], index: 1, kind: input, shape index: {}]
  %s2 = inlined_call_operand.hbm [shape: f32[2,128,128], index: 2, kind: input, shape index: {}]
  %s3 = inlined_call_operand.hbm [shape: f32[128,128], index: 3, kind: input, shape index: {}]
  %s4 = inlined_call_operand.vmem [shape: f32[4,128], index: 4, kind: input, shape index: {}]
  %s5 = inlined_call_operand.hbm [shape: f32[8,128], index: 5, kind: output, shape index: {}]
  %s6 = sld [smem:[#allocation0]]
  $region46: #{tpu_custom_call.1} parent=0
    _
  %s8 = ssub.s32 1, %s6
  %s9 = scalar_select 0, %s8, %s6
  $region1: #{tpu_custom_call.1} parent=0
    #allocation2 [shape = 'u8[4096]{0}', space=vmem, size = 0x1000, scoped, tag = 'input window, operand 0, single buffered']
    #allocation3 [shape = 's32[1]{0}', space=sflag, size = 0x4, scoped, tag = 'scoped memory for tpu_custom_call.1']
    #allocation4 [shape = 's32[1]{0}', space=sflag, size = 0x4, scoped, tag = 'scoped memory for tpu_custom_call.1']
    #allocation5 [shape = 'u8[65536]{0}', space=vmem, size = 0x10000, scoped, tag = 'input window, operand 1, single buffered']
    #allocation6 [shape = 's32[1]{0}', space=sflag, size = 0x4, scoped, tag = 'scoped memory for tpu_custom_call.1']
    #allocation7 [shape = 'u8[131072]{0}', space=vmem, size = 0x20000, scoped, tag = 'input window, operand 2, single buffered']
    #allocation8 [shape = 'u8[65536]{0}', space=vmem, size = 0x10000, scoped, tag = 'input window, operand 3, single buffered']
    #allocation9 [shape = 's32[1]{0}', space=sflag, size = 0x4, scoped, tag = 'scoped memory for tpu_custom_call.1']
    #allocation10 [shape = 'u8[4096]{0}', space=vmem, size = 0x1000, scoped, tag = 'output window, operand 0, single buffered']
    %10 = vsyncpa [#allocation3], 0
    %11 = vsyncpa [#allocation6], 0
    %12 = vsyncpa [#allocation9], 0
    %13 = vsyncpa [#allocation4], 0
    // Predicated region
    $region2: #{tpu_custom_call.1} parent=1 // pred_check
      _
    $region3: #{tpu_custom_call.1} parent=1 // pred_check_branch
      %15 = sbr.rel (0) target = $region5
    $region4: #{tpu_custom_call.1} parent=1 // pred_region
      %s17 = ssub.s32 128, 128
      %18 = vsyncadd [#allocation3], %s17
      %s20 = sshll.u32 [#allocation2], 4
      %s21 = int_to_ptr.vmem [resolvable:$true] %s20
      %23 = dma.hbm_to_vmem [thread:$0]  %s0, 128, %s21, [#allocation3]
    $region5: #{tpu_custom_call.1} parent=1 // pred_fallthru
      _
    // Predicated region
    $region6: #{tpu_custom_call.1} parent=1 // pred_check
      _
    $region7: #{tpu_custom_call.1} parent=1 // pred_check_branch
      %25 = sbr.rel (0) target = $region9
    $region8: #{tpu_custom_call.1} parent=1 // pred_region
      %s27 = ssub.s32 2048, 2048
      %28 = vsyncadd [#allocation6], %s27
      %s29 = sshll.u32 [#allocation5], 4
      %s30 = int_to_ptr.vmem [resolvable:$true] %s29
      %35 = dma.hbm_to_vmem [thread:$0]  %s1, 2048, %s30, [#allocation6], 128, 128, 8
    $region9: #{tpu_custom_call.1} parent=1 // pred_fallthru
      _
    // Predicated region
    $region10: #{tpu_custom_call.1} parent=1 // pred_check
      _
    $region11: #{tpu_custom_call.1} parent=1 // pred_check_branch
      %37 = sbr.rel (0) target = $region13
    $region12: #{tpu_custom_call.1} parent=1 // pred_region
      %s39 = ssub.s32 4096, 4096
      %40 = vsyncadd [#allocation6], %s39
      %s41 = sshll.u32 [#allocation7], 4
      %s42 = int_to_ptr.vmem [resolvable:$true] %s41
      %47 = dma.hbm_to_vmem [thread:$0]  %s2, 4096, %s42, [#allocation6], 128, 128, 8
    $region13: #{tpu_custom_call.1} parent=1 // pred_fallthru
      _
    // Predicated region
    $region14: #{tpu_custom_call.1} parent=1 // pred_check
      _
    $region15: #{tpu_custom_call.1} parent=1 // pred_check_branch
      %49 = sbr.rel (0) target = $region17
    $region16: #{tpu_custom_call.1} parent=1 // pred_region
      %s51 = ssub.s32 2048, 2048
      %52 = vsyncadd [#allocation9], %s51
      %s53 = sshll.u32 [#allocation8], 4
      %s54 = int_to_ptr.vmem [resolvable:$true] %s53
      %59 = dma.hbm_to_vmem [thread:$0]  %s3, 2048, %s54, [#allocation9], 128, 128, 8
    $region17: #{tpu_custom_call.1} parent=1 // pred_fallthru
      _
    // Predicated region
    $region18: #{tpu_custom_call.1} parent=1 // pred_check
      _
    $region19: #{tpu_custom_call.1} parent=1 // pred_check_branch
      %61 = sbr.rel (0) target = $region21
    $region20: #{tpu_custom_call.1} parent=1 // pred_region
      _
    $region21: #{tpu_custom_call.1} parent=1 // pred_fallthru
      _
    // Predicated region
    $region22: #{tpu_custom_call.1} parent=1 // pred_check
      _
    $region23: #{tpu_custom_call.1} parent=1 // pred_check_branch
      %63 = sbr.rel (0) target = $region25
    $region24: #{tpu_custom_call.1} parent=1 // pred_region
      %64 = dma.done [#allocation3], 128
    $region25: #{tpu_custom_call.1} parent=1 // pred_fallthru
      _
    // Predicated region
    $region26: #{tpu_custom_call.1} parent=1 // pred_check
      _
    $region27: #{tpu_custom_call.1} parent=1 // pred_check_branch
      %66 = sbr.rel (0) target = $region29
    $region28: #{tpu_custom_call.1} parent=1 // pred_region
      %67 = dma.done [#allocation6], 2048
    $region29: #{tpu_custom_call.1} parent=1 // pred_fallthru
      _
    // Predicated region
    $region30: #{tpu_custom_call.1} parent=1 // pred_check
      _
    $region31: #{tpu_custom_call.1} parent=1 // pred_check_branch
      %69 = sbr.rel (0) target = $region33
    $region32: #{tpu_custom_call.1} parent=1 // pred_region
      %70 = dma.done [#allocation6], 4096
    $region33: #{tpu_custom_call.1} parent=1 // pred_fallthru
      _
    // Predicated region
    $region34: #{tpu_custom_call.1} parent=1 // pred_check
      _
    $region35: #{tpu_custom_call.1} parent=1 // pred_check_branch
      %72 = sbr.rel (0) target = $region37
    $region36: #{tpu_custom_call.1} parent=1 // pred_region
      %73 = dma.done [#allocation9], 2048
    $region37: #{tpu_custom_call.1} parent=1 // pred_fallthru
      _
    %v74 = vld [vmem:[%s4] sm:$0xf]
    %v75 = vld [vmem:[#allocation2] sm:$0xff]
    %v76 = vld [vmem:[#allocation5] sm:$0xff]
    %v77 = vld [vmem:[#allocation5 + $0x8] sm:$0xff]
    %v78 = vld [vmem:[#allocation5 + $0x10] sm:$0xff]
    %v79 = vld [vmem:[#allocation5 + $0x18] sm:$0xff]
    %v80 = vld [vmem:[#allocation5 + $0x20] sm:$0xff]
    %v81 = vld [vmem:[#allocation5 + $0x28] sm:$0xff]
    %v82 = vld [vmem:[#allocation5 + $0x30] sm:$0xff]
    %v83 = vld [vmem:[#allocation5 + $0x38] sm:$0xff]
    %v84 = vld [vmem:[#allocation5 + $0x40] sm:$0xff]
    %v85 = vld [vmem:[#allocation5 + $0x48] sm:$0xff]
    %v86 = vld [vmem:[#allocation5 + $0x50] sm:$0xff]
    %v87 = vld [vmem:[#allocation5 + $0x58] sm:$0xff]
    %v88 = vld [vmem:[#allocation5 + $0x60] sm:$0xff]
    %v89 = vld [vmem:[#allocation5 + $0x68] sm:$0xff]
    %v90 = vld [vmem:[#allocation5 + $0x70] sm:$0xff]
    %v91 = vld [vmem:[#allocation5 + $0x78] sm:$0xff]
    %v92 = vlaneseq
    %v93 = vshrl.u32 %v92, 7
    %v94 = vsub.s32 0, %v93
    %v95 = vrot.slane %v74, %v94
    %96 = vmatprep.subr.mxu0 0.0
    %97 = vmatpush1.msra.mxu0 %v76
    %98 = vmatprep.subr.mxu0 0.0
    %99 = vmatpush1.msra.mxu0 %v77
    %100 = vmatprep.subr.mxu0 0.0
    %101 = vmatpush1.msra.mxu0 %v78
    %102 = vmatprep.subr.mxu0 0.0
    %103 = vmatpush1.msra.mxu0 %v79
    %104 = vmatprep.subr.mxu0 0.0
    %105 = vmatpush1.msra.mxu0 %v80
    %106 = vmatprep.subr.mxu0 0.0
    %107 = vmatpush1.msra.mxu0 %v81
    %108 = vmatprep.subr.mxu0 0.0
    %109 = vmatpush1.msra.mxu0 %v82
    %110 = vmatprep.subr.mxu0 0.0
    %111 = vmatpush1.msra.mxu0 %v83
    %112 = vmatprep.subr.mxu0 0.0
    %113 = vmatpush1.msra.mxu0 %v84
    %114 = vmatprep.subr.mxu0 0.0
    %115 = vmatpush1.msra.mxu0 %v85
    %116 = vmatprep.subr.mxu0 0.0
    %117 = vmatpush1.msra.mxu0 %v86
    %118 = vmatprep.subr.mxu0 0.0
    %119 = vmatpush1.msra.mxu0 %v87
    %120 = vmatprep.subr.mxu0 0.0
    %121 = vmatpush1.msra.mxu0 %v88
    %122 = vmatprep.subr.mxu0 0.0
    %123 = vmatpush1.msra.mxu0 %v89
    %124 = vmatprep.subr.mxu0 0.0
    %125 = vmatpush1.msra.mxu0 %v90
    %126 = vmatprep.subr.mxu0 0.0
    %127 = vmatpush1.msra.mxu0 %v91
    %128 = vmatprep.subr.mxu0 0.0
    %129 = vmatpush1.msra.mxu0 0.0
    %130 = vmatprep.subr.mxu0 0.0
    %131 = vmatpush1.msra.mxu0 0.0
    %132 = vmatprep.subr.mxu0 0.0
    %133 = vmatpush1.msra.mxu0 0.0
    %134 = vmatprep.subr.mxu0 0.0
    %135 = vmatpush1.msra.mxu0 0.0
    %136 = vmatprep.subr.mxu0 0.0
    %137 = vmatpush1.msra.mxu0 0.0
    %138 = vmatprep.subr.mxu0 0.0
    %139 = vmatpush1.msra.mxu0 0.0
    %140 = vmatprep.subr.mxu0 0.0
    %141 = vmatpush1.msra.mxu0 0.0
    %142 = vmatprep.subr.mxu0 0.0
    %143 = vmatpush1.msra.mxu0 0.0
    %144 = vmatprep.subr.mxu0 0.0
    %145 = vmatpush1.msra.mxu0 0.0
    %146 = vmatprep.subr.mxu0 0.0
    %147 = vmatpush1.msra.mxu0 0.0
    %148 = vmatprep.subr.mxu0 0.0
    %149 = vmatpush1.msra.mxu0 0.0
    %150 = vmatprep.subr.mxu0 0.0
    %151 = vmatpush1.msra.mxu0 0.0
    %152 = vmatprep.subr.mxu0 0.0
    %153 = vmatpush1.msra.mxu0 0.0
    %154 = vmatprep.subr.mxu0 0.0
    %155 = vmatpush1.msra.mxu0 0.0
    %156 = vmatprep.subr.mxu0 0.0
    %157 = vmatpush1.msra.mxu0 0.0
    %158 = vmatprep.subr.mxu0 0.0
    %159 = vmatpush1.msra.mxu0 0.0
    %160 = vmatprep.mubr.f32.mxu0 0.0
    %161 = vmatmul.mubr.f32.gmra.mrb[0].mxu0 %v75
    %v162 = vpop.f32.mrb[0].mxu0
    %v163 = vadd.f32 %v95, %v162
    %v164 = vpop.f32.mrb[0].mxu0
    %165 = vdwg.mxu0
    %v166 = vtanh.pop %v163
    %v167 = vld [vmem:[#allocation7] sm:$0xff]
    %v168 = vld [vmem:[#allocation7 + $0x8] sm:$0xff]
    %v169 = vld [vmem:[#allocation7 + $0x10] sm:$0xff]
    %v170 = vld [vmem:[#allocation7 + $0x18] sm:$0xff]
    %v171 = vld [vmem:[#allocation7 + $0x20] sm:$0xff]
    %v172 = vld [vmem:[#allocation7 + $0x28] sm:$0xff]
    %v173 = vld [vmem:[#allocation7 + $0x30] sm:$0xff]
    %v174 = vld [vmem:[#allocation7 + $0x38] sm:$0xff]
    %v175 = vld [vmem:[#allocation7 + $0x40] sm:$0xff]
    %v176 = vld [vmem:[#allocation7 + $0x48] sm:$0xff]
    %v177 = vld [vmem:[#allocation7 + $0x50] sm:$0xff]
    %v178 = vld [vmem:[#allocation7 + $0x58] sm:$0xff]
    %v179 = vld [vmem:[#allocation7 + $0x60] sm:$0xff]
    %v180 = vld [vmem:[#allocation7 + $0x68] sm:$0xff]
    %v181 = vld [vmem:[#allocation7 + $0x70] sm:$0xff]
    %v182 = vld [vmem:[#allocation7 + $0x78] sm:$0xff]
    %v183 = vlaneseq
    %v184 = vshrl.u32 %v183, 7
    %v185 = vsub.s32 1, %v184
    %v186 = vrot.slane %v74, %v185
    %187 = vmatprep.subr.mxu0 0.0
    %188 = vmatpush1.msra.mxu0 %v167
    %189 = vmatprep.subr.mxu0 0.0
    %190 = vmatpush1.msra.mxu0 %v168
    %191 = vmatprep.subr.mxu0 0.0
    %192 = vmatpush1.msra.mxu0 %v169
    %193 = vmatprep.subr.mxu0 0.0
    %194 = vmatpush1.msra.mxu0 %v170
    %195 = vmatprep.subr.mxu0 0.0
    %196 = vmatpush1.msra.mxu0 %v171
    %197 = vmatprep.subr.mxu0 0.0
    %198 = vmatpush1.msra.mxu0 %v172
    %199 = vmatprep.subr.mxu0 0.0
    %200 = vmatpush1.msra.mxu0 %v173
    %201 = vmatprep.subr.mxu0 0.0
    %202 = vmatpush1.msra.mxu0 %v174
    %203 = vmatprep.subr.mxu0 0.0
    %204 = vmatpush1.msra.mxu0 %v175
    %205 = vmatprep.subr.mxu0 0.0
    %206 = vmatpush1.msra.mxu0 %v176
    %207 = vmatprep.subr.mxu0 0.0
    %208 = vmatpush1.msra.mxu0 %v177
    %209 = vmatprep.subr.mxu0 0.0
    %210 = vmatpush1.msra.mxu0 %v178
    %211 = vmatprep.subr.mxu0 0.0
    %212 = vmatpush1.msra.mxu0 %v179
    %213 = vmatprep.subr.mxu0 0.0
    %214 = vmatpush1.msra.mxu0 %v180
    %215 = vmatprep.subr.mxu0 0.0
    %216 = vmatpush1.msra.mxu0 %v181
    %217 = vmatprep.subr.mxu0 0.0
    %218 = vmatpush1.msra.mxu0 %v182
    %219 = vmatprep.subr.mxu0 0.0
    %220 = vmatpush1.msra.mxu0 0.0
    %221 = vmatprep.subr.mxu0 0.0
    %222 = vmatpush1.msra.mxu0 0.0
    %223 = vmatprep.subr.mxu0 0.0
    %224 = vmatpush1.msra.mxu0 0.0
    %225 = vmatprep.subr.mxu0 0.0
    %226 = vmatpush1.msra.mxu0 0.0
    %227 = vmatprep.subr.mxu0 0.0
    %228 = vmatpush1.msra.mxu0 0.0
    %229 = vmatprep.subr.mxu0 0.0
    %230 = vmatpush1.msra.mxu0 0.0
    %231 = vmatprep.subr.mxu0 0.0
    %232 = vmatpush1.msra.mxu0 0.0
    %233 = vmatprep.subr.mxu0 0.0
    %234 = vmatpush1.msra.mxu0 0.0
    %235 = vmatprep.subr.mxu0 0.0
    %236 = vmatpush1.msra.mxu0 0.0
    %237 = vmatprep.subr.mxu0 0.0
    %238 = vmatpush1.msra.mxu0 0.0
    %239 = vmatprep.subr.mxu0 0.0
    %240 = vmatpush1.msra.mxu0 0.0
    %241 = vmatprep.subr.mxu0 0.0
    %242 = vmatpush1.msra.mxu0 0.0
    %243 = vmatprep.subr.mxu0 0.0
    %244 = vmatpush1.msra.mxu0 0.0
    %245 = vmatprep.subr.mxu0 0.0
    %246 = vmatpush1.msra.mxu0 0.0
    %247 = vmatprep.subr.mxu0 0.0
    %248 = vmatpush1.msra.mxu0 0.0
    %249 = vmatprep.subr.mxu0 0.0
    %250 = vmatpush1.msra.mxu0 0.0
    %251 = vmatprep.mubr.f32.mxu0 0.0
    %252 = vmatmul.mubr.f32.gmra.mrb[0].mxu0 %v166
    %v253 = vpop.f32.mrb[0].mxu0
    %v254 = vadd.f32 %v186, %v253
    %v255 = vpop.f32.mrb[0].mxu0
    %256 = vdwg.mxu0
    %v257 = vtanh.pop %v254
    %s258 = scalar_lea.vmem [#allocation7], 128
    %v259 = vld [vmem:[%s258] sm:$0xff]
    %v260 = vld [vmem:[%s258 + $0x8] sm:$0xff]
    %v261 = vld [vmem:[%s258 + $0x10] sm:$0xff]
    %v262 = vld [vmem:[%s258 + $0x18] sm:$0xff]
    %v263 = vld [vmem:[%s258 + $0x20] sm:$0xff]
    %v264 = vld [vmem:[%s258 + $0x28] sm:$0xff]
    %v265 = vld [vmem:[%s258 + $0x30] sm:$0xff]
    %v266 = vld [vmem:[%s258 + $0x38] sm:$0xff]
    %v267 = vld [vmem:[%s258 + $0x40] sm:$0xff]
    %v268 = vld [vmem:[%s258 + $0x48] sm:$0xff]
    %v269 = vld [vmem:[%s258 + $0x50] sm:$0xff]
    %v270 = vld [vmem:[%s258 + $0x58] sm:$0xff]
    %v271 = vld [vmem:[%s258 + $0x60] sm:$0xff]
    %v272 = vld [vmem:[%s258 + $0x68] sm:$0xff]
    %v273 = vld [vmem:[%s258 + $0x70] sm:$0xff]
    %v274 = vld [vmem:[%s258 + $0x78] sm:$0xff]
    %v275 = vlaneseq
    %v276 = vshrl.u32 %v275, 7
    %v277 = vsub.s32 2, %v276
    %v278 = vrot.slane %v74, %v277
    %279 = vmatprep.subr.mxu0 0.0
    %280 = vmatpush1.msra.mxu0 %v259
    %281 = vmatprep.subr.mxu0 0.0
    %282 = vmatpush1.msra.mxu0 %v260
    %283 = vmatprep.subr.mxu0 0.0
    %284 = vmatpush1.msra.mxu0 %v261
    %285 = vmatprep.subr.mxu0 0.0
    %286 = vmatpush1.msra.mxu0 %v262
    %287 = vmatprep.subr.mxu0 0.0
    %288 = vmatpush1.msra.mxu0 %v263
    %289 = vmatprep.subr.mxu0 0.0
    %290 = vmatpush1.msra.mxu0 %v264
    %291 = vmatprep.subr.mxu0 0.0
    %292 = vmatpush1.msra.mxu0 %v265
    %293 = vmatprep.subr.mxu0 0.0
    %294 = vmatpush1.msra.mxu0 %v266
    %295 = vmatprep.subr.mxu0 0.0
    %296 = vmatpush1.msra.mxu0 %v267
    %297 = vmatprep.subr.mxu0 0.0
    %298 = vmatpush1.msra.mxu0 %v268
    %299 = vmatprep.subr.mxu0 0.0
    %300 = vmatpush1.msra.mxu0 %v269
    %301 = vmatprep.subr.mxu0 0.0
    %302 = vmatpush1.msra.mxu0 %v270
    %303 = vmatprep.subr.mxu0 0.0
    %304 = vmatpush1.msra.mxu0 %v271
    %305 = vmatprep.subr.mxu0 0.0
    %306 = vmatpush1.msra.mxu0 %v272
    %307 = vmatprep.subr.mxu0 0.0
    %308 = vmatpush1.msra.mxu0 %v273
    %309 = vmatprep.subr.mxu0 0.0
    %310 = vmatpush1.msra.mxu0 %v274
    %311 = vmatprep.subr.mxu0 0.0
    %312 = vmatpush1.msra.mxu0 0.0
    %313 = vmatprep.subr.mxu0 0.0
    %314 = vmatpush1.msra.mxu0 0.0
    %315 = vmatprep.subr.mxu0 0.0
    %316 = vmatpush1.msra.mxu0 0.0
    %317 = vmatprep.subr.mxu0 0.0
    %318 = vmatpush1.msra.mxu0 0.0
    %319 = vmatprep.subr.mxu0 0.0
    %320 = vmatpush1.msra.mxu0 0.0
    %321 = vmatprep.subr.mxu0 0.0
    %322 = vmatpush1.msra.mxu0 0.0
    %323 = vmatprep.subr.mxu0 0.0
    %324 = vmatpush1.msra.mxu0 0.0
    %325 = vmatprep.subr.mxu0 0.0
    %326 = vmatpush1.msra.mxu0 0.0
    %327 = vmatprep.subr.mxu0 0.0
    %328 = vmatpush1.msra.mxu0 0.0
    %329 = vmatprep.subr.mxu0 0.0
    %330 = vmatpush1.msra.mxu0 0.0
    %331 = vmatprep.subr.mxu0 0.0
    %332 = vmatpush1.msra.mxu0 0.0
    %333 = vmatprep.subr.mxu0 0.0
    %334 = vmatpush1.msra.mxu0 0.0
    %335 = vmatprep.subr.mxu0 0.0
    %336 = vmatpush1.msra.mxu0 0.0
    %337 = vmatprep.subr.mxu0 0.0
    %338 = vmatpush1.msra.mxu0 0.0
    %339 = vmatprep.subr.mxu0 0.0
    %340 = vmatpush1.msra.mxu0 0.0
    %341 = vmatprep.subr.mxu0 0.0
    %342 = vmatpush1.msra.mxu0 0.0
    %343 = vmatprep.mubr.f32.mxu0 0.0
    %344 = vmatmul.mubr.f32.gmra.mrb[0].mxu0 %v257
    %v345 = vpop.f32.mrb[0].mxu0
    %v346 = vadd.f32 %v278, %v345
    %v347 = vpop.f32.mrb[0].mxu0
    %348 = vdwg.mxu0
    %v349 = vtanh.pop %v346
    %v350 = vld [vmem:[#allocation8] sm:$0xff]
    %v351 = vld [vmem:[#allocation8 + $0x8] sm:$0xff]
    %v352 = vld [vmem:[#allocation8 + $0x10] sm:$0xff]
    %v353 = vld [vmem:[#allocation8 + $0x18] sm:$0xff]
    %v354 = vld [vmem:[#allocation8 + $0x20] sm:$0xff]
    %v355 = vld [vmem:[#allocation8 + $0x28] sm:$0xff]
    %v356 = vld [vmem:[#allocation8 + $0x30] sm:$0xff]
    %v357 = vld [vmem:[#allocation8 + $0x38] sm:$0xff]
    %v358 = vld [vmem:[#allocation8 + $0x40] sm:$0xff]
    %v359 = vld [vmem:[#allocation8 + $0x48] sm:$0xff]
    %v360 = vld [vmem:[#allocation8 + $0x50] sm:$0xff]
    %v361 = vld [vmem:[#allocation8 + $0x58] sm:$0xff]
    %v362 = vld [vmem:[#allocation8 + $0x60] sm:$0xff]
    %v363 = vld [vmem:[#allocation8 + $0x68] sm:$0xff]
    %v364 = vld [vmem:[#allocation8 + $0x70] sm:$0xff]
    %v365 = vld [vmem:[#allocation8 + $0x78] sm:$0xff]
    %v366 = vlaneseq
    %v367 = vshrl.u32 %v366, 7
    %v368 = vsub.s32 3, %v367
    %v369 = vrot.slane %v74, %v368
    %370 = vmatprep.subr.mxu0 0.0
    %371 = vmatpush1.msra.mxu0 %v350
    %372 = vmatprep.subr.mxu0 0.0
    %373 = vmatpush1.msra.mxu0 %v351
    %374 = vmatprep.subr.mxu0 0.0
    %375 = vmatpush1.msra.mxu0 %v352
    %376 = vmatprep.subr.mxu0 0.0
    %377 = vmatpush1.msra.mxu0 %v353
    %378 = vmatprep.subr.mxu0 0.0
    %379 = vmatpush1.msra.mxu0 %v354
    %380 = vmatprep.subr.mxu0 0.0
    %381 = vmatpush1.msra.mxu0 %v355
    %382 = vmatprep.subr.mxu0 0.0
    %383 = vmatpush1.msra.mxu0 %v356
    %384 = vmatprep.subr.mxu0 0.0
    %385 = vmatpush1.msra.mxu0 %v357
    %386 = vmatprep.subr.mxu0 0.0
    %387 = vmatpush1.msra.mxu0 %v358
    %388 = vmatprep.subr.mxu0 0.0
    %389 = vmatpush1.msra.mxu0 %v359
    %390 = vmatprep.subr.mxu0 0.0
    %391 = vmatpush1.msra.mxu0 %v360
    %392 = vmatprep.subr.mxu0 0.0
    %393 = vmatpush1.msra.mxu0 %v361
    %394 = vmatprep.subr.mxu0 0.0
    %395 = vmatpush1.msra.mxu0 %v362
    %396 = vmatprep.subr.mxu0 0.0
    %397 = vmatpush1.msra.mxu0 %v363
    %398 = vmatprep.subr.mxu0 0.0
    %399 = vmatpush1.msra.mxu0 %v364
    %400 = vmatprep.subr.mxu0 0.0
    %401 = vmatpush1.msra.mxu0 %v365
    %402 = vmatprep.subr.mxu0 0.0
    %403 = vmatpush1.msra.mxu0 0.0
    %404 = vmatprep.subr.mxu0 0.0
    %405 = vmatpush1.msra.mxu0 0.0
    %406 = vmatprep.subr.mxu0 0.0
    %407 = vmatpush1.msra.mxu0 0.0
    %408 = vmatprep.subr.mxu0 0.0
    %409 = vmatpush1.msra.mxu0 0.0
    %410 = vmatprep.subr.mxu0 0.0
    %411 = vmatpush1.msra.mxu0 0.0
    %412 = vmatprep.subr.mxu0 0.0
    %413 = vmatpush1.msra.mxu0 0.0
    %414 = vmatprep.subr.mxu0 0.0
    %415 = vmatpush1.msra.mxu0 0.0
    %416 = vmatprep.subr.mxu0 0.0
    %417 = vmatpush1.msra.mxu0 0.0
    %418 = vmatprep.subr.mxu0 0.0
    %419 = vmatpush1.msra.mxu0 0.0
    %420 = vmatprep.subr.mxu0 0.0
    %421 = vmatpush1.msra.mxu0 0.0
    %422 = vmatprep.subr.mxu0 0.0
    %423 = vmatpush1.msra.mxu0 0.0
    %424 = vmatprep.subr.mxu0 0.0
    %425 = vmatpush1.msra.mxu0 0.0
    %426 = vmatprep.subr.mxu0 0.0
    %427 = vmatpush1.msra.mxu0 0.0
    %428 = vmatprep.subr.mxu0 0.0
    %429 = vmatpush1.msra.mxu0 0.0
    %430 = vmatprep.subr.mxu0 0.0
    %431 = vmatpush1.msra.mxu0 0.0
    %432 = vmatprep.subr.mxu0 0.0
    %433 = vmatpush1.msra.mxu0 0.0
    %434 = vmatprep.mubr.f32.mxu0 0.0
    %435 = vmatmul.mubr.f32.gmra.mrb[0].mxu0 %v349
    %v436 = vpop.f32.mrb[0].mxu0
    %v437 = vadd.f32 %v369, %v436
    %v438 = vpop.f32.mrb[0].mxu0
    %439 = vdwg.mxu0
    %v440 = vxor.u32 %v437, 2147483648
    %v441 = vmul.f32 %v440, 1.442695
    %v442 = vpow.pop %v441
    %v443 = vadd.f32 %v442, 1.0
    %v444 = vrcp.pop %v443
    %v445 = vmul.f32 1.0, %v444
    %446 = vst [vmem:[#allocation10] sm:$0xff] %v445
    // Predicated region
    $region38: #{tpu_custom_call.1} parent=1 // pred_check
      _
    $region39: #{tpu_custom_call.1} parent=1 // pred_check_branch
      %448 = sbr.rel (0) target = $region41
    $region40: #{tpu_custom_call.1} parent=1 // pred_region
      %s450 = ssub.s32 128, 128
      %451 = vsyncadd [#allocation4], %s450
      %s453 = sshll.u32 [#allocation10], 4
      %s454 = int_to_ptr.vmem [resolvable:$true] %s453
      %456 = dma.vmem_to_hbm [thread:$0]  %s454, 128, %s5, [#allocation4]
    $region41: #{tpu_custom_call.1} parent=1 // pred_fallthru
      _
    // Predicated region
    $region42: #{tpu_custom_call.1} parent=1 // pred_check
      _
    $region43: #{tpu_custom_call.1} parent=1 // pred_check_branch
      %458 = sbr.rel (0) target = $region45
    $region44: #{tpu_custom_call.1} parent=1 // pred_region
      %459 = dma.done [#allocation4], 128
    $region45: #{tpu_custom_call.1} parent=1 // pred_fallthru
      _
    %460 = vsyncpa [#allocation3], 1
    %461 = vsyncpa [#allocation6], 1
    %462 = vsyncpa [#allocation9], 1
    %463 = vsyncpa [#allocation4], 1

// kernel: tpu_custom_call.1
$region0: #{tpu_custom_call.1}
  #allocation0 [shape = 'u32[]', space=smem, size = 0x4, offset = 0x4, fixed_abs, tag = 'smem constant byte address 0x4 - core index']
  #allocation1 [shape = 'u32[144,128]{1,0:T(1,128)}', space=vmem, size = 0x12000, scoped, tag = 'internal scratch']
  %s0 = inlined_call_operand.hbm [shape: f32[8,128], index: 0, kind: input, shape index: {}]
  %s1 = inlined_call_operand.hbm [shape: f32[128,128], index: 1, kind: input, shape index: {}]
  %s2 = inlined_call_operand.hbm [shape: f32[2,128,128], index: 2, kind: input, shape index: {}]
  %s3 = inlined_call_operand.hbm [shape: f32[128,128], index: 3, kind: input, shape index: {}]
  %s4 = inlined_call_operand.vmem [shape: f32[4,128], index: 4, kind: input, shape index: {}]
  %s5 = inlined_call_operand.hbm [shape: f32[8,128], index: 5, kind: output, shape index: {}]
  %s6 = sld [smem:[#allocation0]]
  $region46: #{tpu_custom_call.1} parent=0
    _
  %s8 = ssub.s32 1, %s6
  %s9 = scalar_select 0, %s8, %s6
  $region1: #{tpu_custom_call.1} parent=0
    #allocation2 [shape = 'u8[4096]{0}', space=vmem, size = 0x1000, scoped, tag = 'input window, operand 0, single buffered']
    #allocation3 [shape = 's32[1]{0}', space=sflag, size = 0x4, scoped, tag = 'scoped memory for tpu_custom_call.1']
    #allocation4 [shape = 's32[1]{0}', space=sflag, size = 0x4, scoped, tag = 'scoped memory for tpu_custom_call.1']
    #allocation5 [shape = 'u8[65536]{0}', space=vmem, size = 0x10000, scoped, tag = 'input window, operand 1, single buffered']
    #allocation6 [shape = 's32[1]{0}', space=sflag, size = 0x4, scoped, tag = 'scoped memory for tpu_custom_call.1']
    #allocation7 [shape = 'u8[131072]{0}', space=vmem, size = 0x20000, scoped, tag = 'input window, operand 2, single buffered']
    #allocation8 [shape = 'u8[65536]{0}', space=vmem, size = 0x10000, scoped, tag = 'input window, operand 3, single buffered']
    #allocation9 [shape = 's32[1]{0}', space=sflag, size = 0x4, scoped, tag = 'scoped memory for tpu_custom_call.1']
    #allocation10 [shape = 'u8[4096]{0}', space=vmem, size = 0x1000, scoped, tag = 'output window, operand 0, single buffered']
    %10 = vsyncpa [#allocation3], 0
    %11 = vsyncpa [#allocation6], 0
    %12 = vsyncpa [#allocation9], 0
    %13 = vsyncpa [#allocation4], 0
    // Predicated region
    $region2: #{tpu_custom_call.1} parent=1 // pred_check
      _
    $region3: #{tpu_custom_call.1} parent=1 // pred_check_branch
      %15 = sbr.rel (0) target = $region5
    $region4: #{tpu_custom_call.1} parent=1 // pred_region
      %s17 = ssub.s32 128, 128
      %18 = vsyncadd [#allocation3], %s17
      %s20 = sshll.u32 [#allocation2], 4
      %s21 = int_to_ptr.vmem [resolvable:$true] %s20
      %23 = dma.hbm_to_vmem [thread:$0]  %s0, 128, %s21, [#allocation3]
    $region5: #{tpu_custom_call.1} parent=1 // pred_fallthru
      _
    // Predicated region
    $region6: #{tpu_custom_call.1} parent=1 // pred_check
      _
    $region7: #{tpu_custom_call.1} parent=1 // pred_check_branch
      %25 = sbr.rel (0) target = $region9
    $region8: #{tpu_custom_call.1} parent=1 // pred_region
      %s27 = ssub.s32 2048, 2048
      %28 = vsyncadd [#allocation6], %s27
      %s29 = sshll.u32 [#allocation5], 4
      %s30 = int_to_ptr.vmem [resolvable:$true] %s29
      %35 = dma.hbm_to_vmem [thread:$0]  %s1, 2048, %s30, [#allocation6], 128, 128, 8
    $region9: #{tpu_custom_call.1} parent=1 // pred_fallthru
      _
    // Predicated region
    $region10: #{tpu_custom_call.1} parent=1 // pred_check
      _
    $region11: #{tpu_custom_call.1} parent=1 // pred_check_branch
      %37 = sbr.rel (0) target = $region13
    $region12: #{tpu_custom_call.1} parent=1 // pred_region
      %s39 = ssub.s32 4096, 4096
      %40 = vsyncadd [#allocation6], %s39
      %s41 = sshll.u32 [#allocation7], 4
      %s42 = int_to_ptr.vmem [resolvable:$true] %s41
      %47 = dma.hbm_to_vmem [thread:$0]  %s2, 4096, %s42, [#allocation6], 128, 128, 8
    $region13: #{tpu_custom_call.1} parent=1 // pred_fallthru
      _
    // Predicated region
    $region14: #{tpu_custom_call.1} parent=1 // pred_check
      _
    $region15: #{tpu_custom_call.1} parent=1 // pred_check_branch
      %49 = sbr.rel (0) target = $region17
    $region16: #{tpu_custom_call.1} parent=1 // pred_region
      %s51 = ssub.s32 2048, 2048
      %52 = vsyncadd [#allocation9], %s51
      %s53 = sshll.u32 [#allocation8], 4
      %s54 = int_to_ptr.vmem [resolvable:$true] %s53
      %59 = dma.hbm_to_vmem [thread:$0]  %s3, 2048, %s54, [#allocation9], 128, 128, 8
    $region17: #{tpu_custom_call.1} parent=1 // pred_fallthru
      _
    // Predicated region
    $region18: #{tpu_custom_call.1} parent=1 // pred_check
      _
    $region19: #{tpu_custom_call.1} parent=1 // pred_check_branch
      %61 = sbr.rel (0) target = $region21
    $region20: #{tpu_custom_call.1} parent=1 // pred_region
      _
    $region21: #{tpu_custom_call.1} parent=1 // pred_fallthru
      _
    // Predicated region
    $region22: #{tpu_custom_call.1} parent=1 // pred_check
      _
    $region23: #{tpu_custom_call.1} parent=1 // pred_check_branch
      %63 = sbr.rel (0) target = $region25
    $region24: #{tpu_custom_call.1} parent=1 // pred_region
      %64 = dma.done [#allocation3], 128
    $region25: #{tpu_custom_call.1} parent=1 // pred_fallthru
      _
    // Predicated region
    $region26: #{tpu_custom_call.1} parent=1 // pred_check
      _
    $region27: #{tpu_custom_call.1} parent=1 // pred_check_branch
      %66 = sbr.rel (0) target = $region29
    $region28: #{tpu_custom_call.1} parent=1 // pred_region
      %67 = dma.done [#allocation6], 2048
    $region29: #{tpu_custom_call.1} parent=1 // pred_fallthru
      _
    // Predicated region
    $region30: #{tpu_custom_call.1} parent=1 // pred_check
      _
    $region31: #{tpu_custom_call.1} parent=1 // pred_check_branch
      %69 = sbr.rel (0) target = $region33
    $region32: #{tpu_custom_call.1} parent=1 // pred_region
      %70 = dma.done [#allocation6], 4096
    $region33: #{tpu_custom_call.1} parent=1 // pred_fallthru
      _
    // Predicated region
    $region34: #{tpu_custom_call.1} parent=1 // pred_check
      _
    $region35: #{tpu_custom_call.1} parent=1 // pred_check_branch
      %72 = sbr.rel (0) target = $region37
    $region36: #{tpu_custom_call.1} parent=1 // pred_region
      %73 = dma.done [#allocation9], 2048
    $region37: #{tpu_custom_call.1} parent=1 // pred_fallthru
      _
    %v74 = vld [vmem:[%s4] sm:$0xf]
    %v75 = vld [vmem:[#allocation2] sm:$0xff]
    %v76 = vld [vmem:[#allocation5] sm:$0xff]
    %v77 = vld [vmem:[#allocation5 + $0x8] sm:$0xff]
    %v78 = vld [vmem:[#allocation5 + $0x10] sm:$0xff]
    %v79 = vld [vmem:[#allocation5 + $0x18] sm:$0xff]
    %v80 = vld [vmem:[#allocation5 + $0x20] sm:$0xff]
    %v81 = vld [vmem:[#allocation5 + $0x28] sm:$0xff]
    %v82 = vld [vmem:[#allocation5 + $0x30] sm:$0xff]
    %v83 = vld [vmem:[#allocation5 + $0x38] sm:$0xff]
    %v84 = vld [vmem:[#allocation5 + $0x40] sm:$0xff]
    %v85 = vld [vmem:[#allocation5 + $0x48] sm:$0xff]
    %v86 = vld [vmem:[#allocation5 + $0x50] sm:$0xff]
    %v87 = vld [vmem:[#allocation5 + $0x58] sm:$0xff]
    %v88 = vld [vmem:[#allocation5 + $0x60] sm:$0xff]
    %v89 = vld [vmem:[#allocation5 + $0x68] sm:$0xff]
    %v90 = vld [vmem:[#allocation5 + $0x70] sm:$0xff]
    %v91 = vld [vmem:[#allocation5 + $0x78] sm:$0xff]
    %v92 = vlaneseq
    %v93 = vshrl.u32 %v92, 7
    %v94 = vsub.s32 0, %v93
    %v95 = vrot.slane %v74, %v94
    %96 = vmatprep.subr.mxu0 0.0
    %97 = vmatpush1.msra.mxu0 %v76
    %98 = vmatprep.subr.mxu0 0.0
    %99 = vmatpush1.msra.mxu0 %v77
    %100 = vmatprep.subr.mxu0 0.0
    %101 = vmatpush1.msra.mxu0 %v78
    %102 = vmatprep.subr.mxu0 0.0
    %103 = vmatpush1.msra.mxu0 %v79
    %104 = vmatprep.subr.mxu0 0.0
    %105 = vmatpush1.msra.mxu0 %v80
    %106 = vmatprep.subr.mxu0 0.0
    %107 = vmatpush1.msra.mxu0 %v81
    %108 = vmatprep.subr.mxu0 0.0
    %109 = vmatpush1.msra.mxu0 %v82
    %110 = vmatprep.subr.mxu0 0.0
    %111 = vmatpush1.msra.mxu0 %v83
    %112 = vmatprep.subr.mxu0 0.0
    %113 = vmatpush1.msra.mxu0 %v84
    %114 = vmatprep.subr.mxu0 0.0
    %115 = vmatpush1.msra.mxu0 %v85
    %116 = vmatprep.subr.mxu0 0.0
    %117 = vmatpush1.msra.mxu0 %v86
    %118 = vmatprep.subr.mxu0 0.0
    %119 = vmatpush1.msra.mxu0 %v87
    %120 = vmatprep.subr.mxu0 0.0
    %121 = vmatpush1.msra.mxu0 %v88
    %122 = vmatprep.subr.mxu0 0.0
    %123 = vmatpush1.msra.mxu0 %v89
    %124 = vmatprep.subr.mxu0 0.0
    %125 = vmatpush1.msra.mxu0 %v90
    %126 = vmatprep.subr.mxu0 0.0
    %127 = vmatpush1.msra.mxu0 %v91
    %128 = vmatprep.subr.mxu0 0.0
    %129 = vmatpush1.msra.mxu0 0.0
    %130 = vmatprep.subr.mxu0 0.0
    %131 = vmatpush1.msra.mxu0 0.0
    %132 = vmatprep.subr.mxu0 0.0
    %133 = vmatpush1.msra.mxu0 0.0
    %134 = vmatprep.subr.mxu0 0.0
    %135 = vmatpush1.msra.mxu0 0.0
    %136 = vmatprep.subr.mxu0 0.0
    %137 = vmatpush1.msra.mxu0 0.0
    %138 = vmatprep.subr.mxu0 0.0
    %139 = vmatpush1.msra.mxu0 0.0
    %140 = vmatprep.subr.mxu0 0.0
    %141 = vmatpush1.msra.mxu0 0.0
    %142 = vmatprep.subr.mxu0 0.0
    %143 = vmatpush1.msra.mxu0 0.0
    %144 = vmatprep.subr.mxu0 0.0
    %145 = vmatpush1.msra.mxu0 0.0
    %146 = vmatprep.subr.mxu0 0.0
    %147 = vmatpush1.msra.mxu0 0.0
    %148 = vmatprep.subr.mxu0 0.0
    %149 = vmatpush1.msra.mxu0 0.0
    %150 = vmatprep.subr.mxu0 0.0
    %151 = vmatpush1.msra.mxu0 0.0
    %152 = vmatprep.subr.mxu0 0.0
    %153 = vmatpush1.msra.mxu0 0.0
    %154 = vmatprep.subr.mxu0 0.0
    %155 = vmatpush1.msra.mxu0 0.0
    %156 = vmatprep.subr.mxu0 0.0
    %157 = vmatpush1.msra.mxu0 0.0
    %158 = vmatprep.subr.mxu0 0.0
    %159 = vmatpush1.msra.mxu0 0.0
    %160 = vmatprep.mubr.f32.mxu0 0.0
    %161 = vmatmul.mubr.f32.gmra.mrb[0].mxu0 %v75
    %v162 = vpop.f32.mrb[0].mxu0
    %v163 = vadd.f32 %v95, %v162
    %v164 = vpop.f32.mrb[0].mxu0
    %165 = vdwg.mxu0
    %v166 = vtanh.pop %v163
    %v167 = vld [vmem:[#allocation7] sm:$0xff]
    %v168 = vld [vmem:[#allocation7 + $0x8] sm:$0xff]
    %v169 = vld [vmem:[#allocation7 + $0x10] sm:$0xff]
    %v170 = vld [vmem:[#allocation7 + $0x18] sm:$0xff]
    %v171 = vld [vmem:[#allocation7 + $0x20] sm:$0xff]
    %v172 = vld [vmem:[#allocation7 + $0x28] sm:$0xff]
    %v173 = vld [vmem:[#allocation7 + $0x30] sm:$0xff]
    %v174 = vld [vmem:[#allocation7 + $0x38] sm:$0xff]
    %v175 = vld [vmem:[#allocation7 + $0x40] sm:$0xff]
    %v176 = vld [vmem:[#allocation7 + $0x48] sm:$0xff]
    %v177 = vld [vmem:[#allocation7 + $0x50] sm:$0xff]
    %v178 = vld [vmem:[#allocation7 + $0x58] sm:$0xff]
    %v179 = vld [vmem:[#allocation7 + $0x60] sm:$0xff]
    %v180 = vld [vmem:[#allocation7 + $0x68] sm:$0xff]
    %v181 = vld [vmem:[#allocation7 + $0x70] sm:$0xff]
    %v182 = vld [vmem:[#allocation7 + $0x78] sm:$0xff]
    %v183 = vlaneseq
    %v184 = vshrl.u32 %v183, 7
    %v185 = vsub.s32 1, %v184
    %v186 = vrot.slane %v74, %v185
    %187 = vmatprep.subr.mxu0 0.0
    %188 = vmatpush1.msra.mxu0 %v167
    %189 = vmatprep.subr.mxu0 0.0
    %190 = vmatpush1.msra.mxu0 %v168
    %191 = vmatprep.subr.mxu0 0.0
    %192 = vmatpush1.msra.mxu0 %v169
    %193 = vmatprep.subr.mxu0 0.0
    %194 = vmatpush1.msra.mxu0 %v170
    %195 = vmatprep.subr.mxu0 0.0
    %196 = vmatpush1.msra.mxu0 %v171
    %197 = vmatprep.subr.mxu0 0.0
    %198 = vmatpush1.msra.mxu0 %v172
    %199 = vmatprep.subr.mxu0 0.0
    %200 = vmatpush1.msra.mxu0 %v173
    %201 = vmatprep.subr.mxu0 0.0
    %202 = vmatpush1.msra.mxu0 %v174
    %203 = vmatprep.subr.mxu0 0.0
    %204 = vmatpush1.msra.mxu0 %v175
    %205 = vmatprep.subr.mxu0 0.0
    %206 = vmatpush1.msra.mxu0 %v176
    %207 = vmatprep.subr.mxu0 0.0
    %208 = vmatpush1.msra.mxu0 %v177
    %209 = vmatprep.subr.mxu0 0.0
    %210 = vmatpush1.msra.mxu0 %v178
    %211 = vmatprep.subr.mxu0 0.0
    %212 = vmatpush1.msra.mxu0 %v179
    %213 = vmatprep.subr.mxu0 0.0
    %214 = vmatpush1.msra.mxu0 %v180
    %215 = vmatprep.subr.mxu0 0.0
    %216 = vmatpush1.msra.mxu0 %v181
    %217 = vmatprep.subr.mxu0 0.0
    %218 = vmatpush1.msra.mxu0 %v182
    %219 = vmatprep.subr.mxu0 0.0
    %220 = vmatpush1.msra.mxu0 0.0
    %221 = vmatprep.subr.mxu0 0.0
    %222 = vmatpush1.msra.mxu0 0.0
    %223 = vmatprep.subr.mxu0 0.0
    %224 = vmatpush1.msra.mxu0 0.0
    %225 = vmatprep.subr.mxu0 0.0
    %226 = vmatpush1.msra.mxu0 0.0
    %227 = vmatprep.subr.mxu0 0.0
    %228 = vmatpush1.msra.mxu0 0.0
    %229 = vmatprep.subr.mxu0 0.0
    %230 = vmatpush1.msra.mxu0 0.0
    %231 = vmatprep.subr.mxu0 0.0
    %232 = vmatpush1.msra.mxu0 0.0
    %233 = vmatprep.subr.mxu0 0.0
    %234 = vmatpush1.msra.mxu0 0.0
    %235 = vmatprep.subr.mxu0 0.0
    %236 = vmatpush1.msra.mxu0 0.0
    %237 = vmatprep.subr.mxu0 0.0
    %238 = vmatpush1.msra.mxu0 0.0
    %239 = vmatprep.subr.mxu0 0.0
    %240 = vmatpush1.msra.mxu0 0.0
    %241 = vmatprep.subr.mxu0 0.0
    %242 = vmatpush1.msra.mxu0 0.0
    %243 = vmatprep.subr.mxu0 0.0
    %244 = vmatpush1.msra.mxu0 0.0
    %245 = vmatprep.subr.mxu0 0.0
    %246 = vmatpush1.msra.mxu0 0.0
    %247 = vmatprep.subr.mxu0 0.0
    %248 = vmatpush1.msra.mxu0 0.0
    %249 = vmatprep.subr.mxu0 0.0
    %250 = vmatpush1.msra.mxu0 0.0
    %251 = vmatprep.mubr.f32.mxu0 0.0
    %252 = vmatmul.mubr.f32.gmra.mrb[0].mxu0 %v166
    %v253 = vpop.f32.mrb[0].mxu0
    %v254 = vadd.f32 %v186, %v253
    %v255 = vpop.f32.mrb[0].mxu0
    %256 = vdwg.mxu0
    %v257 = vtanh.pop %v254
    %s258 = scalar_lea.vmem [#allocation7], 128
    %v259 = vld [vmem:[%s258] sm:$0xff]
    %v260 = vld [vmem:[%s258 + $0x8] sm:$0xff]
    %v261 = vld [vmem:[%s258 + $0x10] sm:$0xff]
    %v262 = vld [vmem:[%s258 + $0x18] sm:$0xff]
    %v263 = vld [vmem:[%s258 + $0x20] sm:$0xff]
    %v264 = vld [vmem:[%s258 + $0x28] sm:$0xff]
    %v265 = vld [vmem:[%s258 + $0x30] sm:$0xff]
    %v266 = vld [vmem:[%s258 + $0x38] sm:$0xff]
    %v267 = vld [vmem:[%s258 + $0x40] sm:$0xff]
    %v268 = vld [vmem:[%s258 + $0x48] sm:$0xff]
    %v269 = vld [vmem:[%s258 + $0x50] sm:$0xff]
    %v270 = vld [vmem:[%s258 + $0x58] sm:$0xff]
    %v271 = vld [vmem:[%s258 + $0x60] sm:$0xff]
    %v272 = vld [vmem:[%s258 + $0x68] sm:$0xff]
    %v273 = vld [vmem:[%s258 + $0x70] sm:$0xff]
    %v274 = vld [vmem:[%s258 + $0x78] sm:$0xff]
    %v275 = vlaneseq
    %v276 = vshrl.u32 %v275, 7
    %v277 = vsub.s32 2, %v276
    %v278 = vrot.slane %v74, %v277
    %279 = vmatprep.subr.mxu0 0.0
    %280 = vmatpush1.msra.mxu0 %v259
    %281 = vmatprep.subr.mxu0 0.0
    %282 = vmatpush1.msra.mxu0 %v260
    %283 = vmatprep.subr.mxu0 0.0
    %284 = vmatpush1.msra.mxu0 %v261
    %285 = vmatprep.subr.mxu0 0.0
    %286 = vmatpush1.msra.mxu0 %v262
    %287 = vmatprep.subr.mxu0 0.0
    %288 = vmatpush1.msra.mxu0 %v263
    %289 = vmatprep.subr.mxu0 0.0
    %290 = vmatpush1.msra.mxu0 %v264
    %291 = vmatprep.subr.mxu0 0.0
    %292 = vmatpush1.msra.mxu0 %v265
    %293 = vmatprep.subr.mxu0 0.0
    %294 = vmatpush1.msra.mxu0 %v266
    %295 = vmatprep.subr.mxu0 0.0
    %296 = vmatpush1.msra.mxu0 %v267
    %297 = vmatprep.subr.mxu0 0.0
    %298 = vmatpush1.msra.mxu0 %v268
    %299 = vmatprep.subr.mxu0 0.0
    %300 = vmatpush1.msra.mxu0 %v269
    %301 = vmatprep.subr.mxu0 0.0
    %302 = vmatpush1.msra.mxu0 %v270
    %303 = vmatprep.subr.mxu0 0.0
    %304 = vmatpush1.msra.mxu0 %v271
    %305 = vmatprep.subr.mxu0 0.0
    %306 = vmatpush1.msra.mxu0 %v272
    %307 = vmatprep.subr.mxu0 0.0
    %308 = vmatpush1.msra.mxu0 %v273
    %309 = vmatprep.subr.mxu0 0.0
    %310 = vmatpush1.msra.mxu0 %v274
    %311 = vmatprep.subr.mxu0 0.0
    %312 = vmatpush1.msra.mxu0 0.0
    %313 = vmatprep.subr.mxu0 0.0
    %314 = vmatpush1.msra.mxu0 0.0
    %315 = vmatprep.subr.mxu0 0.0
    %316 = vmatpush1.msra.mxu0 0.0
    %317 = vmatprep.subr.mxu0 0.0
    %318 = vmatpush1.msra.mxu0 0.0
    %319 = vmatprep.subr.mxu0 0.0
    %320 = vmatpush1.msra.mxu0 0.0
    %321 = vmatprep.subr.mxu0 0.0
    %322 = vmatpush1.msra.mxu0 0.0
    %323 = vmatprep.subr.mxu0 0.0
    %324 = vmatpush1.msra.mxu0 0.0
    %325 = vmatprep.subr.mxu0 0.0
    %326 = vmatpush1.msra.mxu0 0.0
    %327 = vmatprep.subr.mxu0 0.0
    %328 = vmatpush1.msra.mxu0 0.0
    %329 = vmatprep.subr.mxu0 0.0
    %330 = vmatpush1.msra.mxu0 0.0
    %331 = vmatprep.subr.mxu0 0.0
    %332 = vmatpush1.msra.mxu0 0.0
    %333 = vmatprep.subr.mxu0 0.0
    %334 = vmatpush1.msra.mxu0 0.0
    %335 = vmatprep.subr.mxu0 0.0
    %336 = vmatpush1.msra.mxu0 0.0
    %337 = vmatprep.subr.mxu0 0.0
    %338 = vmatpush1.msra.mxu0 0.0
    %339 = vmatprep.subr.mxu0 0.0
    %340 = vmatpush1.msra.mxu0 0.0
    %341 = vmatprep.subr.mxu0 0.0
    %342 = vmatpush1.msra.mxu0 0.0
    %343 = vmatprep.mubr.f32.mxu0 0.0
    %344 = vmatmul.mubr.f32.gmra.mrb[0].mxu0 %v257
    %v345 = vpop.f32.mrb[0].mxu0
    %v346 = vadd.f32 %v278, %v345
    %v347 = vpop.f32.mrb[0].mxu0
    %348 = vdwg.mxu0
    %v349 = vtanh.pop %v346
    %v350 = vld [vmem:[#allocation8] sm:$0xff]
    %v351 = vld [vmem:[#allocation8 + $0x8] sm:$0xff]
    %v352 = vld [vmem:[#allocation8 + $0x10] sm:$0xff]
    %v353 = vld [vmem:[#allocation8 + $0x18] sm:$0xff]
    %v354 = vld [vmem:[#allocation8 + $0x20] sm:$0xff]
    %v355 = vld [vmem:[#allocation8 + $0x28] sm:$0xff]
    %v356 = vld [vmem:[#allocation8 + $0x30] sm:$0xff]
    %v357 = vld [vmem:[#allocation8 + $0x38] sm:$0xff]
    %v358 = vld [vmem:[#allocation8 + $0x40] sm:$0xff]
    %v359 = vld [vmem:[#allocation8 + $0x48] sm:$0xff]
    %v360 = vld [vmem:[#allocation8 + $0x50] sm:$0xff]
    %v361 = vld [vmem:[#allocation8 + $0x58] sm:$0xff]
    %v362 = vld [vmem:[#allocation8 + $0x60] sm:$0xff]
    %v363 = vld [vmem:[#allocation8 + $0x68] sm:$0xff]
    %v364 = vld [vmem:[#allocation8 + $0x70] sm:$0xff]
    %v365 = vld [vmem:[#allocation8 + $0x78] sm:$0xff]
    %v366 = vlaneseq
    %v367 = vshrl.u32 %v366, 7
    %v368 = vsub.s32 3, %v367
    %v369 = vrot.slane %v74, %v368
    %370 = vmatprep.subr.mxu0 0.0
    %371 = vmatpush1.msra.mxu0 %v350
    %372 = vmatprep.subr.mxu0 0.0
    %373 = vmatpush1.msra.mxu0 %v351
    %374 = vmatprep.subr.mxu0 0.0
    %375 = vmatpush1.msra.mxu0 %v352
    %376 = vmatprep.subr.mxu0 0.0
    %377 = vmatpush1.msra.mxu0 %v353
    %378 = vmatprep.subr.mxu0 0.0
    %379 = vmatpush1.msra.mxu0 %v354
    %380 = vmatprep.subr.mxu0 0.0
    %381 = vmatpush1.msra.mxu0 %v355
    %382 = vmatprep.subr.mxu0 0.0
    %383 = vmatpush1.msra.mxu0 %v356
    %384 = vmatprep.subr.mxu0 0.0
    %385 = vmatpush1.msra.mxu0 %v357
    %386 = vmatprep.subr.mxu0 0.0
    %387 = vmatpush1.msra.mxu0 %v358
    %388 = vmatprep.subr.mxu0 0.0
    %389 = vmatpush1.msra.mxu0 %v359
    %390 = vmatprep.subr.mxu0 0.0
    %391 = vmatpush1.msra.mxu0 %v360
    %392 = vmatprep.subr.mxu0 0.0
    %393 = vmatpush1.msra.mxu0 %v361
    %394 = vmatprep.subr.mxu0 0.0
    %395 = vmatpush1.msra.mxu0 %v362
    %396 = vmatprep.subr.mxu0 0.0
    %397 = vmatpush1.msra.mxu0 %v363
    %398 = vmatprep.subr.mxu0 0.0
    %399 = vmatpush1.msra.mxu0 %v364
    %400 = vmatprep.subr.mxu0 0.0
    %401 = vmatpush1.msra.mxu0 %v365
    %402 = vmatprep.subr.mxu0 0.0
    %403 = vmatpush1.msra.mxu0 0.0
    %404 = vmatprep.subr.mxu0 0.0
    %405 = vmatpush1.msra.mxu0 0.0
    %406 = vmatprep.subr.mxu0 0.0
    %407 = vmatpush1.msra.mxu0 0.0
    %408 = vmatprep.subr.mxu0 0.0
    %409 = vmatpush1.msra.mxu0 0.0
    %410 = vmatprep.subr.mxu0 0.0
    %411 = vmatpush1.msra.mxu0 0.0
    %412 = vmatprep.subr.mxu0 0.0
    %413 = vmatpush1.msra.mxu0 0.0
    %414 = vmatprep.subr.mxu0 0.0
    %415 = vmatpush1.msra.mxu0 0.0
    %416 = vmatprep.subr.mxu0 0.0
    %417 = vmatpush1.msra.mxu0 0.0
    %418 = vmatprep.subr.mxu0 0.0
    %419 = vmatpush1.msra.mxu0 0.0
    %420 = vmatprep.subr.mxu0 0.0
    %421 = vmatpush1.msra.mxu0 0.0
    %422 = vmatprep.subr.mxu0 0.0
    %423 = vmatpush1.msra.mxu0 0.0
    %424 = vmatprep.subr.mxu0 0.0
    %425 = vmatpush1.msra.mxu0 0.0
    %426 = vmatprep.subr.mxu0 0.0
    %427 = vmatpush1.msra.mxu0 0.0
    %428 = vmatprep.subr.mxu0 0.0
    %429 = vmatpush1.msra.mxu0 0.0
    %430 = vmatprep.subr.mxu0 0.0
    %431 = vmatpush1.msra.mxu0 0.0
    %432 = vmatprep.subr.mxu0 0.0
    %433 = vmatpush1.msra.mxu0 0.0
    %434 = vmatprep.mubr.f32.mxu0 0.0
    %435 = vmatmul.mubr.f32.gmra.mrb[0].mxu0 %v349
    %v436 = vpop.f32.mrb[0].mxu0
    %v437 = vadd.f32 %v369, %v436
    %v438 = vpop.f32.mrb[0].mxu0
    %439 = vdwg.mxu0
    %v440 = vxor.u32 %v437, 2147483648
    %v441 = vmul.f32 %v440, 1.442695
    %v442 = vpow.pop %v441
    %v443 = vadd.f32 %v442, 1.0
    %v444 = vrcp.pop %v443
    %v445 = vmul.f32 1.0, %v444
    %446 = vst [vmem:[#allocation10] sm:$0xff] %v445
    // Predicated region
    $region38: #{tpu_custom_call.1} parent=1 // pred_check
      _
    $region39: #{tpu_custom_call.1} parent=1 // pred_check_branch
      %448 = sbr.rel (0) target = $region41
    $region40: #{tpu_custom_call.1} parent=1 // pred_region
      %s450 = ssub.s32 128, 128
      %451 = vsyncadd [#allocation4], %s450
      %s453 = sshll.u32 [#allocation10], 4
      %s454 = int_to_ptr.vmem [resolvable:$true] %s453
      %456 = dma.vmem_to_hbm [thread:$0]  %s454, 128, %s5, [#allocation4]
    $region41: #{tpu_custom_call.1} parent=1 // pred_fallthru
      _
    // Predicated region
    $region42: #{tpu_custom_call.1} parent=1 // pred_check
      _
    $region43: #{tpu_custom_call.1} parent=1 // pred_check_branch
      %458 = sbr.rel (0) target = $region45
    $region44: #{tpu_custom_call.1} parent=1 // pred_region
      %459 = dma.done [#allocation4], 128
    $region45: #{tpu_custom_call.1} parent=1 // pred_fallthru
      _
    %460 = vsyncpa [#allocation3], 1
    %461 = vsyncpa [#allocation6], 1
    %462 = vsyncpa [#allocation9], 1
    %463 = vsyncpa [#allocation4], 1

</llo_original>
